<compile_context>
chip_gen: v6e
topology: v6e:2x2x1
jax: 0.10.0
libtpu: 0.0.40
codegen_flags: <defaults>
</compile_context>

<pallas_src>
import jax
import jax.numpy as jnp
from jax import lax
from jax.experimental import pallas as pl
from jax.experimental.pallas import tpu as pltpu


# ---------------------------------------------------------------------------
# Pallas kernel: fused  out = patches @ W' + b'
# ---------------------------------------------------------------------------
def _patch_embed_kernel(patches_ref, w_ref, b_ref, out_ref):
    # (tm, K) bf16 @ (K, E) bf16 -> f32 accumulate on the MXU.
    acc = jnp.dot(patches_ref[...], w_ref[...], preferred_element_type=jnp.float32)
    out_ref[...] = acc + b_ref[...]


# ---------------------------------------------------------------------------
# Plain-JAX glue: layout-only patchify and algebraic weight folding
# ---------------------------------------------------------------------------
def _round_up(x, m):
    return ((x + m - 1) // m) * m


def _choose_tm(m, target=512):
    """Row-tile size: big (512) when M allows, else split into 2 tiles for megacore."""
    if m >= 2 * target:
        return target
    if m >= 16:
        return _round_up((m + 1) // 2, 8)      # 2 grid steps -> both v7x TCs busy
    return _round_up(m, 8)


def _patchify(x_ncdhw, patch_size):
    """(B, C, D, H, W) -> (B*N, C*pd*ph*pw), feature order (c, kd, kh, kw).

    kernel==stride, so this is a pure permutation (no byte inflation)."""
    pd, ph, pw = patch_size
    b, c, d, h, w = x_ncdhw.shape
    gd, gh, gw = d // pd, h // ph, w // pw
    x = x_ncdhw.reshape(b, c, gd, pd, gh, ph, gw, pw)
    x = jnp.transpose(x, (0, 2, 4, 6, 1, 3, 5, 7))   # (b, d', h', w', c, kd, kh, kw)
    return x.reshape(b * gd * gh * gw, c * pd * ph * pw)


def _proj_w_to_mat(w_oicdhw):
    """PyTorch (E, C, pd, ph, pw) -> (C*pd*ph*pw, E), matching _patchify order."""
    e = w_oicdhw.shape[0]
    return jnp.transpose(w_oicdhw, (1, 2, 3, 4, 0)).reshape(-1, e)


def patch_embed_3d_forward(x, params, patch_size=(4, 16, 16)):
    """Forward of PatchEmbed3D: returns (B, N, embed_dim)."""
    pd, ph, pw = patch_size
    b, c, d, h, w = x.shape
    gd, gh, gw = d // pd, h // ph, w // pw
    n_patches = gd * gh * gw
    e = params["proj_b"].shape[0]
    k = c * pd * ph * pw

    # --- Algebraic fold of the two linear ops (no nonlinearity in between) ---
    w1 = _proj_w_to_mat(params["proj_w"]).astype(jnp.float32)            # (K, E)
    w2 = jnp.transpose(params["mix_w"].reshape(e, e)).astype(jnp.float32)  # (E_in, E_out)
    w_fused = jnp.dot(w1, w2, precision=lax.Precision.HIGHEST).astype(jnp.bfloat16)
    b_fused = (jnp.dot(params["proj_b"].astype(jnp.float32), w2,
                       precision=lax.Precision.HIGHEST)
               + params["mix_b"].astype(jnp.float32)).reshape(1, e)      # f32 (1, E)

    # --- Patchify (pure permutation) + bf16 cast; may be fused into the DMA ---
    patches = _patchify(x, patch_size).astype(jnp.bfloat16)              # (M, K)

    m = b * n_patches
    tm = _choose_tm(m)
    m_pad = _round_up(m, tm)
    if m_pad != m:
        patches = jnp.pad(patches, ((0, m_pad - m), (0, 0)))

    grid = (m_pad // tm,)
    flops = 2 * m_pad * k * e
    bytes_accessed = 2 * (m_pad * k + k * e) + 4 * (e + m_pad * e)

    out = pl.pallas_call(
        _patch_embed_kernel,
        out_shape=jax.ShapeDtypeStruct((m_pad, e), jnp.float32),
        grid_spec=pltpu.PrefetchScalarGridSpec(
            num_scalar_prefetch=0,
            grid=grid,
            in_specs=[
                pl.BlockSpec((tm, k), lambda i: (i, 0)),   # patch rows: tiled over M
                pl.BlockSpec((k, e), lambda i: (0, 0)),    # fused weight: VMEM-resident
                pl.BlockSpec((1, e), lambda i: (0, 0)),    # fused bias
            ],
            out_specs=pl.BlockSpec((tm, e), lambda i: (i, 0)),
        ),
        compiler_params=pltpu.CompilerParams(
            dimension_semantics=("parallel",),             # megacore sharding on v7x
            # Let XLA fuse the patchify permutation / bf16 convert into the
            # Pallas input DMA, removing the materialized (M, K) HBM pass.
            allow_input_fusion=[True, False, False],
        ),
        cost_estimate=pl.CostEstimate(
            flops=flops, transcendentals=0, bytes_accessed=bytes_accessed),
    )(patches, w_fused, b_fused)

    return out[:m].reshape(b, n_patches, e)


# ---------------------------------------------------------------------------
# Pure-JAX reference (sanity check only)
# ---------------------------------------------------------------------------
def _ref_forward(x, params, patch_size=(4, 16, 16)):
    y = lax.conv_general_dilated(
        x, params["proj_w"], window_strides=patch_size, padding="VALID",
        dimension_numbers=("NCDHW", "OIDHW", "NCDHW"),
        precision=lax.Precision.HIGHEST)
    y = y + params["proj_b"].reshape(1, -1, 1, 1, 1)
    z = lax.conv_general_dilated(
        y, params["mix_w"], window_strides=(1, 1, 1), padding="VALID",
        dimension_numbers=("NCDHW", "OIDHW", "NCDHW"),
        precision=lax.Precision.HIGHEST)
    z = z + params["mix_b"].reshape(1, -1, 1, 1, 1)
    b, c, d, h, w = z.shape
    return jnp.transpose(z.reshape(b, c, d * h * w), (0, 2, 1))   # b (d h w) c


if __name__ == "__main__":
    key = jax.random.PRNGKey(0)
    B, C_IN, D, H, W = 2, 1, 16, 64, 64
    PATCH = (4, 16, 16)
    EMBED = 256

    k_x, k_w1, k_b1, k_w2, k_b2 = jax.random.split(key, 5)
    fan_in_proj = C_IN * PATCH[0] * PATCH[1] * PATCH[2]

    x = jax.random.normal(k_x, (B, C_IN, D, H, W), jnp.float32)
    params = {
        "proj_w": jax.random.normal(k_w1, (EMBED, C_IN) + PATCH, jnp.float32)
                  / jnp.sqrt(fan_in_proj),
        "proj_b": jax.random.normal(k_b1, (EMBED,), jnp.float32) * 0.1,
        "mix_w": jax.random.normal(k_w2, (EMBED, EMBED, 1, 1, 1), jnp.float32)
                 / jnp.sqrt(EMBED),
        "mix_b": jax.random.normal(k_b2, (EMBED,), jnp.float32) * 0.1,
    }

    fwd = jax.jit(lambda xx, pp: patch_embed_3d_forward(xx, pp, PATCH))
    out = jax.block_until_ready(fwd(x, params))

    n_expected = (D // PATCH[0]) * (H // PATCH[1]) * (W // PATCH[2])
    assert out.shape == (B, n_expected, EMBED), out.shape

    # Loose tolerance: bf16 operands on the MXU vs HIGHEST-precision f32 conv ref.
    ref = _ref_forward(x, params, PATCH)
    max_err = float(jnp.max(jnp.abs(out - ref)))
    if max_err > 7.5e-2:
        raise AssertionError(f"Pallas output mismatch vs reference, max_err={max_err}")

    print("KERNEL_OK")
</pallas_src>

<mosaic_0001>
module attributes {stable_mosaic.version = 11 : i64} {
  func.func @_patch_embed_kernel(%arg0: i32, %arg1: memref<64x1024xbf16, #tpu.memory_space<vmem>>, %arg2: memref<1024x256xbf16, #tpu.memory_space<vmem>>, %arg3: memref<1x256xf32, #tpu.memory_space<vmem>>, %arg4: memref<64x256xf32, #tpu.memory_space<vmem>>) attributes {dimension_semantics = [#tpu.dimension_semantics<parallel>], iteration_bounds = array<i64: 2>, scalar_prefetch = 0 : i64, scratch_operands = 0 : i64, tpu.core_type = #tpu.core_type<tc>, window_params = [{transform_indices = @transform_0, window_bounds = array<i64: 64, 1024>}, {pipeline_mode = #tpu.pipeline_mode<synchronous>, transform_indices = @transform_1, window_bounds = array<i64: 1024, 256>}, {pipeline_mode = #tpu.pipeline_mode<synchronous>, transform_indices = @transform_2, window_bounds = array<i64: 1, 256>}, {transform_indices = @transform_3, window_bounds = array<i64: 64, 256>}]} {
    %c0 = arith.constant 0 : index
    %c0_0 = arith.constant 0 : index
    %0 = vector.load %arg1[%c0, %c0_0] : memref<64x1024xbf16, #tpu.memory_space<vmem>>, vector<64x1024xbf16>
    %c0_1 = arith.constant 0 : index
    %c0_2 = arith.constant 0 : index
    %1 = vector.load %arg2[%c0_1, %c0_2] : memref<1024x256xbf16, #tpu.memory_space<vmem>>, vector<1024x256xbf16>
    %cst = arith.constant dense<0.000000e+00> : vector<64x256xf32>
    %2 = tpu.matmul %0, %1, %cst {dimension_numbers = #tpu.dot_dimension_numbers<[1], [0], [0], [1], [0, 0, 1, 1], [], []>} : vector<64x1024xbf16>, vector<1024x256xbf16>, vector<64x256xf32> -> vector<64x256xf32>
    %c0_3 = arith.constant 0 : index
    %c0_4 = arith.constant 0 : index
    %3 = vector.load %arg3[%c0_3, %c0_4] : memref<1x256xf32, #tpu.memory_space<vmem>>, vector<1x256xf32>
    %4 = vector.broadcast %3 : vector<1x256xf32> to vector<64x256xf32>
    %5 = arith.addf %2, %4 : vector<64x256xf32>
    %c0_5 = arith.constant 0 : index
    %c0_6 = arith.constant 0 : index
    %6 = vector.load %arg4[%c0_5, %c0_6] : memref<64x256xf32, #tpu.memory_space<vmem>>, vector<64x256xf32>
    tpu.vector_store %arg4[%c0_5, %c0_6], %5 {strides = array<i32>} : memref<64x256xf32, #tpu.memory_space<vmem>>, vector<64x256xf32>,
    return
  }
  func.func @transform_0(%arg0: i32) -> (i32, i32) {
    %c0_i32 = arith.constant 0 : i32
    %c0_i32_0 = arith.constant 0 : i32
    return %arg0, %c0_i32 : i32, i32
  }
  func.func @transform_1(%arg0: i32) -> (i32, i32) {
    %c0_i32 = arith.constant 0 : i32
    %c0_i32_0 = arith.constant 0 : i32
    %c0_i32_1 = arith.constant 0 : i32
    return %c0_i32, %c0_i32_0 : i32, i32
  }
  func.func @transform_2(%arg0: i32) -> (i32, i32) {
    %c0_i32 = arith.constant 0 : i32
    %c0_i32_0 = arith.constant 0 : i32
    %c0_i32_1 = arith.constant 0 : i32
    return %c0_i32, %c0_i32_0 : i32, i32
  }
  func.func @transform_3(%arg0: i32) -> (i32, i32) {
    %c0_i32 = arith.constant 0 : i32
    %c0_i32_0 = arith.constant 0 : i32
    return %arg0, %c0_i32 : i32, i32
  }
}

</mosaic_0001>

<llo_original>
// kernel: _lambda_.1
$region0: #{_lambda_.1}
  #allocation0 [shape = 'u32[]', space=smem, size = 0x4, offset = 0x4, fixed_abs, tag = 'smem constant byte address 0x4 - core index']
  #allocation1 [shape = 'u32[144,128]{1,0:T(1,128)}', space=vmem, size = 0x12000, scoped, tag = 'internal scratch']
  %s0 = inlined_call_operand.vmem [shape: bf16[128,1024], index: 0, kind: input, shape index: {}]
  %s1 = inlined_call_operand.vmem [shape: bf16[1024,256], index: 1, kind: input, shape index: {}]
  %s2 = inlined_call_operand.vmem [shape: f32[1,256], index: 2, kind: input, shape index: {}]
  %s3 = inlined_call_operand.hbm [shape: f32[128,256], index: 3, kind: output, shape index: {}]
  %s4 = sld [smem:[#allocation0]]
  $region45: #{_lambda_.1} parent=0
    _
  %s6 = ssub.s32 1, %s4
  %s7 = scalar_select 0, %s6, %s4
  $region1: #{_lambda_.1} parent=0
    #allocation2 [shape = 'u8[131072]{0}', space=vmem, size = 0x20000, scoped, tag = 'output window, operand 0']
    #allocation3 [shape = 's32[2]{0}', space=sflag, size = 0x8, scoped, tag = 'scoped memory for _lambda_.1']
    %8 = vsyncpa [#allocation3], 0
    %s9 = scalar_lea.sflag [#allocation3], 1
    %10 = vsyncpa %s9, 0
    loop: start=0, step=1, limit=4
    $region2: #{_lambda_.1} parent=1 // loop_pre_header
      _
    $region3: #{_lambda_.1} parent=1 // loop_header
      %s12 = sphi 0, %s16
      %p13 = scmp.ge.s32.totalorder %s12, 4
      %s22 = sphi 0, %s24
      %s25 = sphi 0, %s22
      %s26 = sphi 0, %s25
      %s42 = sphi 0, %s26
      %s46 = sphi 0, %s46
      %s48 = sphi 0, %s46
      %s49 = sphi 0, %s48
      %s63 = sphi 0, %s49
      %s67 = sphi 0, %s67
      %s69 = sphi 0, %s67
      %s70 = sphi 0, %s69
      %s84 = sphi 0, %s70
      %s90 = sphi 0, %s92
      %s93 = sphi 0, %s90
      %s94 = sphi 0, %s93
      %s110 = sphi 0, %s94
    $region4: #{_lambda_.1} parent=1 // loop_header_branch
      %15 = sbr.rel (%p13) target = $region8
    $region5: #{_lambda_.1} parent=1 // loop_body
      %s17 = ssub.s32 %s12, 1
      %s18 = ssub.s32 %s12, 2
      %s19 = sadd.s32 %s12, 1
      %s20 = ssub.s32 %s12, %s19
      %p21 = scmp.eq.s32.totalorder %s20, 0
      %s23 = sadd.s32 %s22, 1
      %s24 = scalar_select %p21, %s22, %s23
      %p27 = pneg %p21
      %p28 = scmp.eq.s32.totalorder %s12, 1
      %p29 = por %p27, %p28
      %p30 = scmp.ne.s32.totalorder %s22, %s25
      %p31 = scmp.eq.s32.totalorder %s12, 0
      %p32 = por %p30, %p31
      %p33 = scmp.ne.s32.totalorder %s22, %s25
      %p34 = scmp.eq.s32.totalorder %s17, 1
      %p35 = por %p33, %p34
      %p36 = scmp.ne.s32.totalorder %s25, %s26
      %p37 = scmp.eq.s32.totalorder %s17, 0
      %p38 = por %p36, %p37
      %p39 = scmp.ne.s32.totalorder %s25, %s26
      %p40 = scmp.eq.s32.totalorder %s18, 1
      %p41 = por %p39, %p40
      %p43 = scmp.ne.s32.totalorder %s26, %s42
      %p44 = scmp.eq.s32.totalorder %s18, 0
      %p45 = por %p43, %p44
      %s47 = sadd.s32 %s46, 1
      %p50 = scmp.eq.s32.totalorder %s12, 1
      %p51 = scmp.ne.s32.totalorder %s46, %s48
      %p52 = scmp.eq.s32.totalorder %s12, 0
      %p53 = por %p51, %p52
      %p54 = scmp.ne.s32.totalorder %s46, %s48
      %p55 = scmp.eq.s32.totalorder %s17, 1
      %p56 = por %p54, %p55
      %p57 = scmp.ne.s32.totalorder %s48, %s49
      %p58 = scmp.eq.s32.totalorder %s17, 0
      %p59 = por %p57, %p58
      %p60 = scmp.ne.s32.totalorder %s48, %s49
      %p61 = scmp.eq.s32.totalorder %s18, 1
      %p62 = por %p60, %p61
      %p64 = scmp.ne.s32.totalorder %s49, %s63
      %p65 = scmp.eq.s32.totalorder %s18, 0
      %p66 = por %p64, %p65
      %s68 = sadd.s32 %s67, 1
      %p71 = scmp.eq.s32.totalorder %s12, 1
      %p72 = scmp.ne.s32.totalorder %s67, %s69
      %p73 = scmp.eq.s32.totalorder %s12, 0
      %p74 = por %p72, %p73
      %p75 = scmp.ne.s32.totalorder %s67, %s69
      %p76 = scmp.eq.s32.totalorder %s17, 1
      %p77 = por %p75, %p76
      %p78 = scmp.ne.s32.totalorder %s69, %s70
      %p79 = scmp.eq.s32.totalorder %s17, 0
      %p80 = por %p78, %p79
      %p81 = scmp.ne.s32.totalorder %s69, %s70
      %p82 = scmp.eq.s32.totalorder %s18, 1
      %p83 = por %p81, %p82
      %p85 = scmp.ne.s32.totalorder %s70, %s84
      %p86 = scmp.eq.s32.totalorder %s18, 0
      %p87 = por %p85, %p86
      %s88 = ssub.s32 %s12, %s19
      %p89 = scmp.eq.s32.totalorder %s88, 0
      %s91 = sadd.s32 %s90, 1
      %s92 = scalar_select %p89, %s90, %s91
      %p95 = pneg %p89
      %p96 = scmp.eq.s32.totalorder %s12, 1
      %p97 = por %p95, %p96
      %p98 = scmp.ne.s32.totalorder %s90, %s93
      %p99 = scmp.eq.s32.totalorder %s12, 0
      %p100 = por %p98, %p99
      %p101 = scmp.ne.s32.totalorder %s90, %s93
      %p102 = scmp.eq.s32.totalorder %s17, 1
      %p103 = por %p101, %p102
      %p104 = scmp.ne.s32.totalorder %s93, %s94
      %p105 = scmp.eq.s32.totalorder %s17, 0
      %p106 = por %p104, %p105
      %p107 = scmp.ne.s32.totalorder %s93, %s94
      %p108 = scmp.eq.s32.totalorder %s18, 1
      %p109 = por %p107, %p108
      %p111 = scmp.ne.s32.totalorder %s94, %s110
      %p112 = scmp.eq.s32.totalorder %s18, 0
      %p113 = por %p111, %p112
      %p114 = scmp.le.s32.totalorder 1, %s12
      %p115 = scmp.lt.s32.totalorder %s12, 3
      %p116 = pnand %p114, %p115
      %p117 = pneg %p116
      // Predicated region
      $region9: #{_lambda_.1} parent=5 // pred_check
        _
      $region10: #{_lambda_.1} parent=5 // pred_check_branch
        %119 = sbr.rel (%p116) target = $region12
      $region11: #{_lambda_.1} parent=5 // pred_region
        %s120 = ssub.s32 %s12, 1
        // Predicated region
        $region13: #{_lambda_.1} parent=11 // pred_check
          %p121 = pneg %p59
        $region14: #{_lambda_.1} parent=11 // pred_check_branch
          %123 = sbr.rel (%p121) target = $region16
        $region15: #{_lambda_.1} parent=11 // pred_region
          _
        $region16: #{_lambda_.1} parent=11 // pred_fallthru
          _
        // Predicated region
        $region17: #{_lambda_.1} parent=11 // pred_check
          %p124 = pneg %p80
        $region18: #{_lambda_.1} parent=11 // pred_check_branch
          %126 = sbr.rel (%p124) target = $region20
        $region19: #{_lambda_.1} parent=11 // pred_region
          _
        $region20: #{_lambda_.1} parent=11 // pred_fallthru
          _
      $region12: #{_lambda_.1} parent=5 // pred_fallthru
        _
      %p127 = scmp.lt.s32.totalorder %s12, 2
      // Predicated region
      $region21: #{_lambda_.1} parent=5 // pred_check
        %p128 = pneg %p127
      $region22: #{_lambda_.1} parent=5 // pred_check_branch
        %130 = sbr.rel (%p128) target = $region24
      $region23: #{_lambda_.1} parent=5 // pred_region
        // Predicated region
        $region25: #{_lambda_.1} parent=23 // pred_check
          %p131 = pneg %p32
        $region26: #{_lambda_.1} parent=23 // pred_check_branch
          %133 = sbr.rel (%p131) target = $region28
        $region27: #{_lambda_.1} parent=23 // pred_region
          %s134 = smul.u32 8, %s12
          %p135 = scmp.lt.s32.totalorder %s134, 15
          %s136 = scalar_select %p135, %s134, 15
          %s137 = smul.addr %s136, 8
          %s138 = smul.addr %s137, 4
          %s139 = scalar_lea.vmem %s0, %s138
          %s140 = smul.u32 8, %s12
        $region28: #{_lambda_.1} parent=23 // pred_fallthru
          _
      $region24: #{_lambda_.1} parent=5 // pred_fallthru
        _
      %p141 = scmp.le.s32.totalorder 1, %s12
      %p142 = scmp.lt.s32.totalorder %s12, 3
      %p143 = pnand %p141, %p142
      %p144 = pneg %p143
      // Predicated region
      $region29: #{_lambda_.1} parent=5 // pred_check
        _
      $region30: #{_lambda_.1} parent=5 // pred_check_branch
        %146 = sbr.rel (%p143) target = $region32
      $region31: #{_lambda_.1} parent=5 // pred_region
        %s147 = ssub.s32 %s12, 1
        %s148 = smul.u32 8, %s17
        %p149 = scmp.lt.s32.totalorder %s148, 15
        %s150 = scalar_select %p149, %s148, 15
        %s151 = smul.addr %s150, 8
        %s152 = smul.addr %s151, 4
        %s153 = scalar_lea.vmem %s0, %s152
        %p154 = pneg %p38
        %p155 = pneg %p35
        %p156 = pneg %p59
        %p157 = pneg %p56
        %p158 = pneg %p80
        %p159 = pneg %p77
        %p160 = pneg %p106
        %p161 = pneg %p103
        %s162 = sand.u32 %s93, 1
        %s163 = scalar_lea.sflag [#allocation3], %s162
        %s164 = sand.u32 %s93, 1
        %s165 = smul.addr %s164, 128
        %s166 = scalar_lea.vmem [#allocation2], %s165
        %s167 = smul.u32 8, %s17
        %p168 = scmp.lt.s32.totalorder %s167, 15
        %s169 = scalar_select %p168, %s167, 15
        %s170 = smul.addr %s169, 8
        %s171 = smul.addr %s170, 4
        %s172 = scalar_lea.vmem %s0, %s171
        %s173 = smul.u32 8, %s17
        %s174 = smul.u32 8, %s17
        %v175 = vld [vmem:[%s172] sm:$0xff]
        %v176 = vld [vmem:[%s172 + $0x8] sm:$0xff]
        %v177 = vld [vmem:[%s172 + $0x10] sm:$0xff]
        %v178 = vld [vmem:[%s172 + $0x18] sm:$0xff]
        %v179 = vld [vmem:[%s172 + $0x20] sm:$0xff]
        %v180 = vld [vmem:[%s172 + $0x28] sm:$0xff]
        %v181 = vld [vmem:[%s172 + $0x30] sm:$0xff]
        %v182 = vld [vmem:[%s172 + $0x38] sm:$0xff]
        %v183 = vld [vmem:[%s172 + $0x40] sm:$0xff]
        %v184 = vld [vmem:[%s172 + $0x48] sm:$0xff]
        %v185 = vld [vmem:[%s172 + $0x50] sm:$0xff]
        %v186 = vld [vmem:[%s172 + $0x58] sm:$0xff]
        %v187 = vld [vmem:[%s172 + $0x60] sm:$0xff]
        %v188 = vld [vmem:[%s172 + $0x68] sm:$0xff]
        %v189 = vld [vmem:[%s172 + $0x70] sm:$0xff]
        %v190 = vld [vmem:[%s172 + $0x78] sm:$0xff]
        %v191 = vld [vmem:[%s172 + $0x80] sm:$0xff]
        %v192 = vld [vmem:[%s172 + $0x88] sm:$0xff]
        %v193 = vld [vmem:[%s172 + $0x90] sm:$0xff]
        %v194 = vld [vmem:[%s172 + $0x98] sm:$0xff]
        %v195 = vld [vmem:[%s172 + $0xa0] sm:$0xff]
        %v196 = vld [vmem:[%s172 + $0xa8] sm:$0xff]
        %v197 = vld [vmem:[%s172 + $0xb0] sm:$0xff]
        %v198 = vld [vmem:[%s172 + $0xb8] sm:$0xff]
        %v199 = vld [vmem:[%s172 + $0xc0] sm:$0xff]
        %v200 = vld [vmem:[%s172 + $0xc8] sm:$0xff]
        %v201 = vld [vmem:[%s172 + $0xd0] sm:$0xff]
        %v202 = vld [vmem:[%s172 + $0xd8] sm:$0xff]
        %v203 = vld [vmem:[%s172 + $0xe0] sm:$0xff]
        %v204 = vld [vmem:[%s172 + $0xe8] sm:$0xff]
        %v205 = vld [vmem:[%s172 + $0xf0] sm:$0xff]
        %v206 = vld [vmem:[%s172 + $0xf8] sm:$0xff]
        %v207 = vld [vmem:[%s1] sm:$0xff]
        %v208 = vld [vmem:[%s1 + $0x8] sm:$0xff]
        %v209 = vld [vmem:[%s1 + $0x10] sm:$0xff]
        %v210 = vld [vmem:[%s1 + $0x18] sm:$0xff]
        %v211 = vld [vmem:[%s1 + $0x20] sm:$0xff]
        %v212 = vld [vmem:[%s1 + $0x28] sm:$0xff]
        %v213 = vld [vmem:[%s1 + $0x30] sm:$0xff]
        %v214 = vld [vmem:[%s1 + $0x38] sm:$0xff]
        %v215 = vld [vmem:[%s1 + $0x40] sm:$0xff]
        %v216 = vld [vmem:[%s1 + $0x48] sm:$0xff]
        %v217 = vld [vmem:[%s1 + $0x50] sm:$0xff]
        %v218 = vld [vmem:[%s1 + $0x58] sm:$0xff]
        %v219 = vld [vmem:[%s1 + $0x60] sm:$0xff]
        %v220 = vld [vmem:[%s1 + $0x68] sm:$0xff]
        %v221 = vld [vmem:[%s1 + $0x70] sm:$0xff]
        %v222 = vld [vmem:[%s1 + $0x78] sm:$0xff]
        %v223 = vld [vmem:[%s1 + $0x80] sm:$0xff]
        %v224 = vld [vmem:[%s1 + $0x88] sm:$0xff]
        %v225 = vld [vmem:[%s1 + $0x90] sm:$0xff]
        %v226 = vld [vmem:[%s1 + $0x98] sm:$0xff]
        %v227 = vld [vmem:[%s1 + $0xa0] sm:$0xff]
        %v228 = vld [vmem:[%s1 + $0xa8] sm:$0xff]
        %v229 = vld [vmem:[%s1 + $0xb0] sm:$0xff]
        %v230 = vld [vmem:[%s1 + $0xb8] sm:$0xff]
        %v231 = vld [vmem:[%s1 + $0xc0] sm:$0xff]
        %v232 = vld [vmem:[%s1 + $0xc8] sm:$0xff]
        %v233 = vld [vmem:[%s1 + $0xd0] sm:$0xff]
        %v234 = vld [vmem:[%s1 + $0xd8] sm:$0xff]
        %v235 = vld [vmem:[%s1 + $0xe0] sm:$0xff]
        %v236 = vld [vmem:[%s1 + $0xe8] sm:$0xff]
        %v237 = vld [vmem:[%s1 + $0xf0] sm:$0xff]
        %v238 = vld [vmem:[%s1 + $0xf8] sm:$0xff]
        %v239 = vld [vmem:[%s1 + $0x100] sm:$0xff]
        %v240 = vld [vmem:[%s1 + $0x108] sm:$0xff]
        %v241 = vld [vmem:[%s1 + $0x110] sm:$0xff]
        %v242 = vld [vmem:[%s1 + $0x118] sm:$0xff]
        %v243 = vld [vmem:[%s1 + $0x120] sm:$0xff]
        %v244 = vld [vmem:[%s1 + $0x128] sm:$0xff]
        %v245 = vld [vmem:[%s1 + $0x130] sm:$0xff]
        %v246 = vld [vmem:[%s1 + $0x138] sm:$0xff]
        %v247 = vld [vmem:[%s1 + $0x140] sm:$0xff]
        %v248 = vld [vmem:[%s1 + $0x148] sm:$0xff]
        %v249 = vld [vmem:[%s1 + $0x150] sm:$0xff]
        %v250 = vld [vmem:[%s1 + $0x158] sm:$0xff]
        %v251 = vld [vmem:[%s1 + $0x160] sm:$0xff]
        %v252 = vld [vmem:[%s1 + $0x168] sm:$0xff]
        %v253 = vld [vmem:[%s1 + $0x170] sm:$0xff]
        %v254 = vld [vmem:[%s1 + $0x178] sm:$0xff]
        %v255 = vld [vmem:[%s1 + $0x180] sm:$0xff]
        %v256 = vld [vmem:[%s1 + $0x188] sm:$0xff]
        %v257 = vld [vmem:[%s1 + $0x190] sm:$0xff]
        %v258 = vld [vmem:[%s1 + $0x198] sm:$0xff]
        %v259 = vld [vmem:[%s1 + $0x1a0] sm:$0xff]
        %v260 = vld [vmem:[%s1 + $0x1a8] sm:$0xff]
        %v261 = vld [vmem:[%s1 + $0x1b0] sm:$0xff]
        %v262 = vld [vmem:[%s1 + $0x1b8] sm:$0xff]
        %v263 = vld [vmem:[%s1 + $0x1c0] sm:$0xff]
        %v264 = vld [vmem:[%s1 + $0x1c8] sm:$0xff]
        %v265 = vld [vmem:[%s1 + $0x1d0] sm:$0xff]
        %v266 = vld [vmem:[%s1 + $0x1d8] sm:$0xff]
        %v267 = vld [vmem:[%s1 + $0x1e0] sm:$0xff]
        %v268 = vld [vmem:[%s1 + $0x1e8] sm:$0xff]
        %v269 = vld [vmem:[%s1 + $0x1f0] sm:$0xff]
        %v270 = vld [vmem:[%s1 + $0x1f8] sm:$0xff]
        %v271 = vld [vmem:[%s1 + $0x200] sm:$0xff]
        %v272 = vld [vmem:[%s1 + $0x208] sm:$0xff]
        %v273 = vld [vmem:[%s1 + $0x210] sm:$0xff]
        %v274 = vld [vmem:[%s1 + $0x218] sm:$0xff]
        %v275 = vld [vmem:[%s1 + $0x220] sm:$0xff]
        %v276 = vld [vmem:[%s1 + $0x228] sm:$0xff]
        %v277 = vld [vmem:[%s1 + $0x230] sm:$0xff]
        %v278 = vld [vmem:[%s1 + $0x238] sm:$0xff]
        %v279 = vld [vmem:[%s1 + $0x240] sm:$0xff]
        %v280 = vld [vmem:[%s1 + $0x248] sm:$0xff]
        %v281 = vld [vmem:[%s1 + $0x250] sm:$0xff]
        %v282 = vld [vmem:[%s1 + $0x258] sm:$0xff]
        %v283 = vld [vmem:[%s1 + $0x260] sm:$0xff]
        %v284 = vld [vmem:[%s1 + $0x268] sm:$0xff]
        %v285 = vld [vmem:[%s1 + $0x270] sm:$0xff]
        %v286 = vld [vmem:[%s1 + $0x278] sm:$0xff]
        %v287 = vld [vmem:[%s1 + $0x280] sm:$0xff]
        %v288 = vld [vmem:[%s1 + $0x288] sm:$0xff]
        %v289 = vld [vmem:[%s1 + $0x290] sm:$0xff]
        %v290 = vld [vmem:[%s1 + $0x298] sm:$0xff]
        %v291 = vld [vmem:[%s1 + $0x2a0] sm:$0xff]
        %v292 = vld [vmem:[%s1 + $0x2a8] sm:$0xff]
        %v293 = vld [vmem:[%s1 + $0x2b0] sm:$0xff]
        %v294 = vld [vmem:[%s1 + $0x2b8] sm:$0xff]
        %v295 = vld [vmem:[%s1 + $0x2c0] sm:$0xff]
        %v296 = vld [vmem:[%s1 + $0x2c8] sm:$0xff]
        %v297 = vld [vmem:[%s1 + $0x2d0] sm:$0xff]
        %v298 = vld [vmem:[%s1 + $0x2d8] sm:$0xff]
        %v299 = vld [vmem:[%s1 + $0x2e0] sm:$0xff]
        %v300 = vld [vmem:[%s1 + $0x2e8] sm:$0xff]
        %v301 = vld [vmem:[%s1 + $0x2f0] sm:$0xff]
        %v302 = vld [vmem:[%s1 + $0x2f8] sm:$0xff]
        %v303 = vld [vmem:[%s1 + $0x300] sm:$0xff]
        %v304 = vld [vmem:[%s1 + $0x308] sm:$0xff]
        %v305 = vld [vmem:[%s1 + $0x310] sm:$0xff]
        %v306 = vld [vmem:[%s1 + $0x318] sm:$0xff]
        %v307 = vld [vmem:[%s1 + $0x320] sm:$0xff]
        %v308 = vld [vmem:[%s1 + $0x328] sm:$0xff]
        %v309 = vld [vmem:[%s1 + $0x330] sm:$0xff]
        %v310 = vld [vmem:[%s1 + $0x338] sm:$0xff]
        %v311 = vld [vmem:[%s1 + $0x340] sm:$0xff]
        %v312 = vld [vmem:[%s1 + $0x348] sm:$0xff]
        %v313 = vld [vmem:[%s1 + $0x350] sm:$0xff]
        %v314 = vld [vmem:[%s1 + $0x358] sm:$0xff]
        %v315 = vld [vmem:[%s1 + $0x360] sm:$0xff]
        %v316 = vld [vmem:[%s1 + $0x368] sm:$0xff]
        %v317 = vld [vmem:[%s1 + $0x370] sm:$0xff]
        %v318 = vld [vmem:[%s1 + $0x378] sm:$0xff]
        %v319 = vld [vmem:[%s1 + $0x380] sm:$0xff]
        %v320 = vld [vmem:[%s1 + $0x388] sm:$0xff]
        %v321 = vld [vmem:[%s1 + $0x390] sm:$0xff]
        %v322 = vld [vmem:[%s1 + $0x398] sm:$0xff]
        %v323 = vld [vmem:[%s1 + $0x3a0] sm:$0xff]
        %v324 = vld [vmem:[%s1 + $0x3a8] sm:$0xff]
        %v325 = vld [vmem:[%s1 + $0x3b0] sm:$0xff]
        %v326 = vld [vmem:[%s1 + $0x3b8] sm:$0xff]
        %v327 = vld [vmem:[%s1 + $0x3c0] sm:$0xff]
        %v328 = vld [vmem:[%s1 + $0x3c8] sm:$0xff]
        %v329 = vld [vmem:[%s1 + $0x3d0] sm:$0xff]
        %v330 = vld [vmem:[%s1 + $0x3d8] sm:$0xff]
        %v331 = vld [vmem:[%s1 + $0x3e0] sm:$0xff]
        %v332 = vld [vmem:[%s1 + $0x3e8] sm:$0xff]
        %v333 = vld [vmem:[%s1 + $0x3f0] sm:$0xff]
        %v334 = vld [vmem:[%s1 + $0x3f8] sm:$0xff]
        %v335 = vld [vmem:[%s2] sm:$0x3]
        %v337 = vlaneseq
        %v338 = vshrl.u32 %v337, 7
        %v339 = vsub.s32 0, %v338
        %v340 = vrot.slane %v335, %v339
        %v341 = vlaneseq
        %v342 = vshrl.u32 %v341, 7
        %v343 = vsub.s32 1, %v342
        %v344 = vrot.slane %v335, %v343
        %v379 = vunpack.c.l.b16 %v175
        %v380 = vunpack.c.h.b16 %v175
        %v381 = vunpack.c.l.b16 %v176
        %v382 = vunpack.c.h.b16 %v176
        %v383 = vunpack.c.l.b16 %v177
        %v384 = vunpack.c.h.b16 %v177
        %v385 = vunpack.c.l.b16 %v178
        %v386 = vunpack.c.h.b16 %v178
        %v387 = vunpack.c.l.b16 %v179
        %v388 = vunpack.c.h.b16 %v179
        %v389 = vunpack.c.l.b16 %v180
        %v390 = vunpack.c.h.b16 %v180
        %v391 = vunpack.c.l.b16 %v181
        %v392 = vunpack.c.h.b16 %v181
        %v393 = vunpack.c.l.b16 %v182
        %v394 = vunpack.c.h.b16 %v182
        %v395 = vunpack.c.l.b16 %v183
        %v396 = vunpack.c.h.b16 %v183
        %v397 = vunpack.c.l.b16 %v184
        %v398 = vunpack.c.h.b16 %v184
        %v399 = vunpack.c.l.b16 %v185
        %v400 = vunpack.c.h.b16 %v185
        %v401 = vunpack.c.l.b16 %v186
        %v402 = vunpack.c.h.b16 %v186
        %v403 = vunpack.c.l.b16 %v187
        %v404 = vunpack.c.h.b16 %v187
        %v405 = vunpack.c.l.b16 %v188
        %v406 = vunpack.c.h.b16 %v188
        %v407 = vunpack.c.l.b16 %v189
        %v408 = vunpack.c.h.b16 %v189
        %v409 = vunpack.c.l.b16 %v190
        %v410 = vunpack.c.h.b16 %v190
        %v411 = vunpack.c.l.b16 %v191
        %v412 = vunpack.c.h.b16 %v191
        %v413 = vunpack.c.l.b16 %v192
        %v414 = vunpack.c.h.b16 %v192
        %v415 = vunpack.c.l.b16 %v193
        %v416 = vunpack.c.h.b16 %v193
        %v417 = vunpack.c.l.b16 %v194
        %v418 = vunpack.c.h.b16 %v194
        %v419 = vunpack.c.l.b16 %v195
        %v420 = vunpack.c.h.b16 %v195
        %v421 = vunpack.c.l.b16 %v196
        %v422 = vunpack.c.h.b16 %v196
        %v423 = vunpack.c.l.b16 %v197
        %v424 = vunpack.c.h.b16 %v197
        %v425 = vunpack.c.l.b16 %v198
        %v426 = vunpack.c.h.b16 %v198
        %v427 = vunpack.c.l.b16 %v199
        %v428 = vunpack.c.h.b16 %v199
        %v429 = vunpack.c.l.b16 %v200
        %v430 = vunpack.c.h.b16 %v200
        %v431 = vunpack.c.l.b16 %v201
        %v432 = vunpack.c.h.b16 %v201
        %v433 = vunpack.c.l.b16 %v202
        %v434 = vunpack.c.h.b16 %v202
        %v435 = vunpack.c.l.b16 %v203
        %v436 = vunpack.c.h.b16 %v203
        %v437 = vunpack.c.l.b16 %v204
        %v438 = vunpack.c.h.b16 %v204
        %v439 = vunpack.c.l.b16 %v205
        %v440 = vunpack.c.h.b16 %v205
        %v441 = vunpack.c.l.b16 %v206
        %v442 = vunpack.c.h.b16 %v206
        %v443 = vpack.c.b16 %v387, %v379
        %v444 = vpack.c.b16 %v388, %v380
        %v445 = vpack.c.b16 %v389, %v381
        %v446 = vpack.c.b16 %v390, %v382
        %v447 = vpack.c.b16 %v391, %v383
        %v448 = vpack.c.b16 %v392, %v384
        %v449 = vpack.c.b16 %v393, %v385
        %v450 = vpack.c.b16 %v394, %v386
        %v451 = vpack.c.b16 %v403, %v395
        %v452 = vpack.c.b16 %v404, %v396
        %v453 = vpack.c.b16 %v405, %v397
        %v454 = vpack.c.b16 %v406, %v398
        %v455 = vpack.c.b16 %v407, %v399
        %v456 = vpack.c.b16 %v408, %v400
        %v457 = vpack.c.b16 %v409, %v401
        %v458 = vpack.c.b16 %v410, %v402
        %v459 = vpack.c.b16 %v419, %v411
        %v460 = vpack.c.b16 %v420, %v412
        %v461 = vpack.c.b16 %v421, %v413
        %v462 = vpack.c.b16 %v422, %v414
        %v463 = vpack.c.b16 %v423, %v415
        %v464 = vpack.c.b16 %v424, %v416
        %v465 = vpack.c.b16 %v425, %v417
        %v466 = vpack.c.b16 %v426, %v418
        %v467 = vpack.c.b16 %v435, %v427
        %v468 = vpack.c.b16 %v436, %v428
        %v469 = vpack.c.b16 %v437, %v429
        %v470 = vpack.c.b16 %v438, %v430
        %v471 = vpack.c.b16 %v439, %v431
        %v472 = vpack.c.b16 %v440, %v432
        %v473 = vpack.c.b16 %v441, %v433
        %v474 = vpack.c.b16 %v442, %v434
        %v635 = vunpack.c.l.b16 %v207
        %v636 = vunpack.c.h.b16 %v207
        %v637 = vunpack.c.l.b16 %v208
        %v638 = vunpack.c.h.b16 %v208
        %v639 = vunpack.c.l.b16 %v209
        %v640 = vunpack.c.h.b16 %v209
        %v641 = vunpack.c.l.b16 %v210
        %v642 = vunpack.c.h.b16 %v210
        %v643 = vunpack.c.l.b16 %v211
        %v644 = vunpack.c.h.b16 %v211
        %v645 = vunpack.c.l.b16 %v212
        %v646 = vunpack.c.h.b16 %v212
        %v647 = vunpack.c.l.b16 %v213
        %v648 = vunpack.c.h.b16 %v213
        %v649 = vunpack.c.l.b16 %v214
        %v650 = vunpack.c.h.b16 %v214
        %v651 = vunpack.c.l.b16 %v215
        %v652 = vunpack.c.h.b16 %v215
        %v653 = vunpack.c.l.b16 %v216
        %v654 = vunpack.c.h.b16 %v216
        %v655 = vunpack.c.l.b16 %v217
        %v656 = vunpack.c.h.b16 %v217
        %v657 = vunpack.c.l.b16 %v218
        %v658 = vunpack.c.h.b16 %v218
        %v659 = vunpack.c.l.b16 %v219
        %v660 = vunpack.c.h.b16 %v219
        %v661 = vunpack.c.l.b16 %v220
        %v662 = vunpack.c.h.b16 %v220
        %v663 = vunpack.c.l.b16 %v221
        %v664 = vunpack.c.h.b16 %v221
        %v665 = vunpack.c.l.b16 %v222
        %v666 = vunpack.c.h.b16 %v222
        %v667 = vunpack.c.l.b16 %v223
        %v668 = vunpack.c.h.b16 %v223
        %v669 = vunpack.c.l.b16 %v224
        %v670 = vunpack.c.h.b16 %v224
        %v671 = vunpack.c.l.b16 %v225
        %v672 = vunpack.c.h.b16 %v225
        %v673 = vunpack.c.l.b16 %v226
        %v674 = vunpack.c.h.b16 %v226
        %v675 = vunpack.c.l.b16 %v227
        %v676 = vunpack.c.h.b16 %v227
        %v677 = vunpack.c.l.b16 %v228
        %v678 = vunpack.c.h.b16 %v228
        %v679 = vunpack.c.l.b16 %v229
        %v680 = vunpack.c.h.b16 %v229
        %v681 = vunpack.c.l.b16 %v230
        %v682 = vunpack.c.h.b16 %v230
        %v683 = vunpack.c.l.b16 %v231
        %v684 = vunpack.c.h.b16 %v231
        %v685 = vunpack.c.l.b16 %v232
        %v686 = vunpack.c.h.b16 %v232
        %v687 = vunpack.c.l.b16 %v233
        %v688 = vunpack.c.h.b16 %v233
        %v689 = vunpack.c.l.b16 %v234
        %v690 = vunpack.c.h.b16 %v234
        %v691 = vunpack.c.l.b16 %v235
        %v692 = vunpack.c.h.b16 %v235
        %v693 = vunpack.c.l.b16 %v236
        %v694 = vunpack.c.h.b16 %v236
        %v695 = vunpack.c.l.b16 %v237
        %v696 = vunpack.c.h.b16 %v237
        %v697 = vunpack.c.l.b16 %v238
        %v698 = vunpack.c.h.b16 %v238
        %v699 = vunpack.c.l.b16 %v239
        %v700 = vunpack.c.h.b16 %v239
        %v701 = vunpack.c.l.b16 %v240
        %v702 = vunpack.c.h.b16 %v240
        %v703 = vunpack.c.l.b16 %v241
        %v704 = vunpack.c.h.b16 %v241
        %v705 = vunpack.c.l.b16 %v242
        %v706 = vunpack.c.h.b16 %v242
        %v707 = vunpack.c.l.b16 %v243
        %v708 = vunpack.c.h.b16 %v243
        %v709 = vunpack.c.l.b16 %v244
        %v710 = vunpack.c.h.b16 %v244
        %v711 = vunpack.c.l.b16 %v245
        %v712 = vunpack.c.h.b16 %v245
        %v713 = vunpack.c.l.b16 %v246
        %v714 = vunpack.c.h.b16 %v246
        %v715 = vunpack.c.l.b16 %v247
        %v716 = vunpack.c.h.b16 %v247
        %v717 = vunpack.c.l.b16 %v248
        %v718 = vunpack.c.h.b16 %v248
        %v719 = vunpack.c.l.b16 %v249
        %v720 = vunpack.c.h.b16 %v249
        %v721 = vunpack.c.l.b16 %v250
        %v722 = vunpack.c.h.b16 %v250
        %v723 = vunpack.c.l.b16 %v251
        %v724 = vunpack.c.h.b16 %v251
        %v725 = vunpack.c.l.b16 %v252
        %v726 = vunpack.c.h.b16 %v252
        %v727 = vunpack.c.l.b16 %v253
        %v728 = vunpack.c.h.b16 %v253
        %v729 = vunpack.c.l.b16 %v254
        %v730 = vunpack.c.h.b16 %v254
        %v731 = vunpack.c.l.b16 %v255
        %v732 = vunpack.c.h.b16 %v255
        %v733 = vunpack.c.l.b16 %v256
        %v734 = vunpack.c.h.b16 %v256
        %v735 = vunpack.c.l.b16 %v257
        %v736 = vunpack.c.h.b16 %v257
        %v737 = vunpack.c.l.b16 %v258
        %v738 = vunpack.c.h.b16 %v258
        %v739 = vunpack.c.l.b16 %v259
        %v740 = vunpack.c.h.b16 %v259
        %v741 = vunpack.c.l.b16 %v260
        %v742 = vunpack.c.h.b16 %v260
        %v743 = vunpack.c.l.b16 %v261
        %v744 = vunpack.c.h.b16 %v261
        %v745 = vunpack.c.l.b16 %v262
        %v746 = vunpack.c.h.b16 %v262
        %v747 = vunpack.c.l.b16 %v263
        %v748 = vunpack.c.h.b16 %v263
        %v749 = vunpack.c.l.b16 %v264
        %v750 = vunpack.c.h.b16 %v264
        %v751 = vunpack.c.l.b16 %v265
        %v752 = vunpack.c.h.b16 %v265
        %v753 = vunpack.c.l.b16 %v266
        %v754 = vunpack.c.h.b16 %v266
        %v755 = vunpack.c.l.b16 %v267
        %v756 = vunpack.c.h.b16 %v267
        %v757 = vunpack.c.l.b16 %v268
        %v758 = vunpack.c.h.b16 %v268
        %v759 = vunpack.c.l.b16 %v269
        %v760 = vunpack.c.h.b16 %v269
        %v761 = vunpack.c.l.b16 %v270
        %v762 = vunpack.c.h.b16 %v270
        %v763 = vunpack.c.l.b16 %v271
        %v764 = vunpack.c.h.b16 %v271
        %v765 = vunpack.c.l.b16 %v272
        %v766 = vunpack.c.h.b16 %v272
        %v767 = vunpack.c.l.b16 %v273
        %v768 = vunpack.c.h.b16 %v273
        %v769 = vunpack.c.l.b16 %v274
        %v770 = vunpack.c.h.b16 %v274
        %v771 = vunpack.c.l.b16 %v275
        %v772 = vunpack.c.h.b16 %v275
        %v773 = vunpack.c.l.b16 %v276
        %v774 = vunpack.c.h.b16 %v276
        %v775 = vunpack.c.l.b16 %v277
        %v776 = vunpack.c.h.b16 %v277
        %v777 = vunpack.c.l.b16 %v278
        %v778 = vunpack.c.h.b16 %v278
        %v779 = vunpack.c.l.b16 %v279
        %v780 = vunpack.c.h.b16 %v279
        %v781 = vunpack.c.l.b16 %v280
        %v782 = vunpack.c.h.b16 %v280
        %v783 = vunpack.c.l.b16 %v281
        %v784 = vunpack.c.h.b16 %v281
        %v785 = vunpack.c.l.b16 %v282
        %v786 = vunpack.c.h.b16 %v282
        %v787 = vunpack.c.l.b16 %v283
        %v788 = vunpack.c.h.b16 %v283
        %v789 = vunpack.c.l.b16 %v284
        %v790 = vunpack.c.h.b16 %v284
        %v791 = vunpack.c.l.b16 %v285
        %v792 = vunpack.c.h.b16 %v285
        %v793 = vunpack.c.l.b16 %v286
        %v794 = vunpack.c.h.b16 %v286
        %v795 = vunpack.c.l.b16 %v287
        %v796 = vunpack.c.h.b16 %v287
        %v797 = vunpack.c.l.b16 %v288
        %v798 = vunpack.c.h.b16 %v288
        %v799 = vunpack.c.l.b16 %v289
        %v800 = vunpack.c.h.b16 %v289
        %v801 = vunpack.c.l.b16 %v290
        %v802 = vunpack.c.h.b16 %v290
        %v803 = vunpack.c.l.b16 %v291
        %v804 = vunpack.c.h.b16 %v291
        %v805 = vunpack.c.l.b16 %v292
        %v806 = vunpack.c.h.b16 %v292
        %v807 = vunpack.c.l.b16 %v293
        %v808 = vunpack.c.h.b16 %v293
        %v809 = vunpack.c.l.b16 %v294
        %v810 = vunpack.c.h.b16 %v294
        %v811 = vunpack.c.l.b16 %v295
        %v812 = vunpack.c.h.b16 %v295
        %v813 = vunpack.c.l.b16 %v296
        %v814 = vunpack.c.h.b16 %v296
        %v815 = vunpack.c.l.b16 %v297
        %v816 = vunpack.c.h.b16 %v297
        %v817 = vunpack.c.l.b16 %v298
        %v818 = vunpack.c.h.b16 %v298
        %v819 = vunpack.c.l.b16 %v299
        %v820 = vunpack.c.h.b16 %v299
        %v821 = vunpack.c.l.b16 %v300
        %v822 = vunpack.c.h.b16 %v300
        %v823 = vunpack.c.l.b16 %v301
        %v824 = vunpack.c.h.b16 %v301
        %v825 = vunpack.c.l.b16 %v302
        %v826 = vunpack.c.h.b16 %v302
        %v827 = vunpack.c.l.b16 %v303
        %v828 = vunpack.c.h.b16 %v303
        %v829 = vunpack.c.l.b16 %v304
        %v830 = vunpack.c.h.b16 %v304
        %v831 = vunpack.c.l.b16 %v305
        %v832 = vunpack.c.h.b16 %v305
        %v833 = vunpack.c.l.b16 %v306
        %v834 = vunpack.c.h.b16 %v306
        %v835 = vunpack.c.l.b16 %v307
        %v836 = vunpack.c.h.b16 %v307
        %v837 = vunpack.c.l.b16 %v308
        %v838 = vunpack.c.h.b16 %v308
        %v839 = vunpack.c.l.b16 %v309
        %v840 = vunpack.c.h.b16 %v309
        %v841 = vunpack.c.l.b16 %v310
        %v842 = vunpack.c.h.b16 %v310
        %v843 = vunpack.c.l.b16 %v311
        %v844 = vunpack.c.h.b16 %v311
        %v845 = vunpack.c.l.b16 %v312
        %v846 = vunpack.c.h.b16 %v312
        %v847 = vunpack.c.l.b16 %v313
        %v848 = vunpack.c.h.b16 %v313
        %v849 = vunpack.c.l.b16 %v314
        %v850 = vunpack.c.h.b16 %v314
        %v851 = vunpack.c.l.b16 %v315
        %v852 = vunpack.c.h.b16 %v315
        %v853 = vunpack.c.l.b16 %v316
        %v854 = vunpack.c.h.b16 %v316
        %v855 = vunpack.c.l.b16 %v317
        %v856 = vunpack.c.h.b16 %v317
        %v857 = vunpack.c.l.b16 %v318
        %v858 = vunpack.c.h.b16 %v318
        %v859 = vunpack.c.l.b16 %v319
        %v860 = vunpack.c.h.b16 %v319
        %v861 = vunpack.c.l.b16 %v320
        %v862 = vunpack.c.h.b16 %v320
        %v863 = vunpack.c.l.b16 %v321
        %v864 = vunpack.c.h.b16 %v321
        %v865 = vunpack.c.l.b16 %v322
        %v866 = vunpack.c.h.b16 %v322
        %v867 = vunpack.c.l.b16 %v323
        %v868 = vunpack.c.h.b16 %v323
        %v869 = vunpack.c.l.b16 %v324
        %v870 = vunpack.c.h.b16 %v324
        %v871 = vunpack.c.l.b16 %v325
        %v872 = vunpack.c.h.b16 %v325
        %v873 = vunpack.c.l.b16 %v326
        %v874 = vunpack.c.h.b16 %v326
        %v875 = vunpack.c.l.b16 %v327
        %v876 = vunpack.c.h.b16 %v327
        %v877 = vunpack.c.l.b16 %v328
        %v878 = vunpack.c.h.b16 %v328
        %v879 = vunpack.c.l.b16 %v329
        %v880 = vunpack.c.h.b16 %v329
        %v881 = vunpack.c.l.b16 %v330
        %v882 = vunpack.c.h.b16 %v330
        %v883 = vunpack.c.l.b16 %v331
        %v884 = vunpack.c.h.b16 %v331
        %v885 = vunpack.c.l.b16 %v332
        %v886 = vunpack.c.h.b16 %v332
        %v887 = vunpack.c.l.b16 %v333
        %v888 = vunpack.c.h.b16 %v333
        %v889 = vunpack.c.l.b16 %v334
        %v890 = vunpack.c.h.b16 %v334
        %v891 = vpack.c.b16 %v637, %v635
        %v892 = vpack.c.b16 %v638, %v636
        %v893 = vpack.c.b16 %v641, %v639
        %v894 = vpack.c.b16 %v642, %v640
        %v895 = vpack.c.b16 %v645, %v643
        %v896 = vpack.c.b16 %v646, %v644
        %v897 = vpack.c.b16 %v649, %v647
        %v898 = vpack.c.b16 %v650, %v648
        %v899 = vpack.c.b16 %v653, %v651
        %v900 = vpack.c.b16 %v654, %v652
        %v901 = vpack.c.b16 %v657, %v655
        %v902 = vpack.c.b16 %v658, %v656
        %v903 = vpack.c.b16 %v661, %v659
        %v904 = vpack.c.b16 %v662, %v660
        %v905 = vpack.c.b16 %v665, %v663
        %v906 = vpack.c.b16 %v666, %v664
        %v907 = vpack.c.b16 %v669, %v667
        %v908 = vpack.c.b16 %v670, %v668
        %v909 = vpack.c.b16 %v673, %v671
        %v910 = vpack.c.b16 %v674, %v672
        %v911 = vpack.c.b16 %v677, %v675
        %v912 = vpack.c.b16 %v678, %v676
        %v913 = vpack.c.b16 %v681, %v679
        %v914 = vpack.c.b16 %v682, %v680
        %v915 = vpack.c.b16 %v685, %v683
        %v916 = vpack.c.b16 %v686, %v684
        %v917 = vpack.c.b16 %v689, %v687
        %v918 = vpack.c.b16 %v690, %v688
        %v919 = vpack.c.b16 %v693, %v691
        %v920 = vpack.c.b16 %v694, %v692
        %v921 = vpack.c.b16 %v697, %v695
        %v922 = vpack.c.b16 %v698, %v696
        %v923 = vpack.c.b16 %v701, %v699
        %v924 = vpack.c.b16 %v702, %v700
        %v925 = vpack.c.b16 %v705, %v703
        %v926 = vpack.c.b16 %v706, %v704
        %v927 = vpack.c.b16 %v709, %v707
        %v928 = vpack.c.b16 %v710, %v708
        %v929 = vpack.c.b16 %v713, %v711
        %v930 = vpack.c.b16 %v714, %v712
        %v931 = vpack.c.b16 %v717, %v715
        %v932 = vpack.c.b16 %v718, %v716
        %v933 = vpack.c.b16 %v721, %v719
        %v934 = vpack.c.b16 %v722, %v720
        %v935 = vpack.c.b16 %v725, %v723
        %v936 = vpack.c.b16 %v726, %v724
        %v937 = vpack.c.b16 %v729, %v727
        %v938 = vpack.c.b16 %v730, %v728
        %v939 = vpack.c.b16 %v733, %v731
        %v940 = vpack.c.b16 %v734, %v732
        %v941 = vpack.c.b16 %v737, %v735
        %v942 = vpack.c.b16 %v738, %v736
        %v943 = vpack.c.b16 %v741, %v739
        %v944 = vpack.c.b16 %v742, %v740
        %v945 = vpack.c.b16 %v745, %v743
        %v946 = vpack.c.b16 %v746, %v744
        %v947 = vpack.c.b16 %v749, %v747
        %v948 = vpack.c.b16 %v750, %v748
        %v949 = vpack.c.b16 %v753, %v751
        %v950 = vpack.c.b16 %v754, %v752
        %v951 = vpack.c.b16 %v757, %v755
        %v952 = vpack.c.b16 %v758, %v756
        %v953 = vpack.c.b16 %v761, %v759
        %v954 = vpack.c.b16 %v762, %v760
        %v955 = vpack.c.b16 %v765, %v763
        %v956 = vpack.c.b16 %v766, %v764
        %v957 = vpack.c.b16 %v769, %v767
        %v958 = vpack.c.b16 %v770, %v768
        %v959 = vpack.c.b16 %v773, %v771
        %v960 = vpack.c.b16 %v774, %v772
        %v961 = vpack.c.b16 %v777, %v775
        %v962 = vpack.c.b16 %v778, %v776
        %v963 = vpack.c.b16 %v781, %v779
        %v964 = vpack.c.b16 %v782, %v780
        %v965 = vpack.c.b16 %v785, %v783
        %v966 = vpack.c.b16 %v786, %v784
        %v967 = vpack.c.b16 %v789, %v787
        %v968 = vpack.c.b16 %v790, %v788
        %v969 = vpack.c.b16 %v793, %v791
        %v970 = vpack.c.b16 %v794, %v792
        %v971 = vpack.c.b16 %v797, %v795
        %v972 = vpack.c.b16 %v798, %v796
        %v973 = vpack.c.b16 %v801, %v799
        %v974 = vpack.c.b16 %v802, %v800
        %v975 = vpack.c.b16 %v805, %v803
        %v976 = vpack.c.b16 %v806, %v804
        %v977 = vpack.c.b16 %v809, %v807
        %v978 = vpack.c.b16 %v810, %v808
        %v979 = vpack.c.b16 %v813, %v811
        %v980 = vpack.c.b16 %v814, %v812
        %v981 = vpack.c.b16 %v817, %v815
        %v982 = vpack.c.b16 %v818, %v816
        %v983 = vpack.c.b16 %v821, %v819
        %v984 = vpack.c.b16 %v822, %v820
        %v985 = vpack.c.b16 %v825, %v823
        %v986 = vpack.c.b16 %v826, %v824
        %v987 = vpack.c.b16 %v829, %v827
        %v988 = vpack.c.b16 %v830, %v828
        %v989 = vpack.c.b16 %v833, %v831
        %v990 = vpack.c.b16 %v834, %v832
        %v991 = vpack.c.b16 %v837, %v835
        %v992 = vpack.c.b16 %v838, %v836
        %v993 = vpack.c.b16 %v841, %v839
        %v994 = vpack.c.b16 %v842, %v840
        %v995 = vpack.c.b16 %v845, %v843
        %v996 = vpack.c.b16 %v846, %v844
        %v997 = vpack.c.b16 %v849, %v847
        %v998 = vpack.c.b16 %v850, %v848
        %v999 = vpack.c.b16 %v853, %v851
        %v1000 = vpack.c.b16 %v854, %v852
        %v1001 = vpack.c.b16 %v857, %v855
        %v1002 = vpack.c.b16 %v858, %v856
        %v1003 = vpack.c.b16 %v861, %v859
        %v1004 = vpack.c.b16 %v862, %v860
        %v1005 = vpack.c.b16 %v865, %v863
        %v1006 = vpack.c.b16 %v866, %v864
        %v1007 = vpack.c.b16 %v869, %v867
        %v1008 = vpack.c.b16 %v870, %v868
        %v1009 = vpack.c.b16 %v873, %v871
        %v1010 = vpack.c.b16 %v874, %v872
        %v1011 = vpack.c.b16 %v877, %v875
        %v1012 = vpack.c.b16 %v878, %v876
        %v1013 = vpack.c.b16 %v881, %v879
        %v1014 = vpack.c.b16 %v882, %v880
        %v1015 = vpack.c.b16 %v885, %v883
        %v1016 = vpack.c.b16 %v886, %v884
        %v1017 = vpack.c.b16 %v889, %v887
        %v1018 = vpack.c.b16 %v890, %v888
        %1147 = vmatprep.subr.bf16.mxu0 %v906
        %1148 = vmatpush1.bf16.msra.mxu0 %v905
        %1149 = vmatprep.subr.bf16.mxu0 %v904
        %1150 = vmatpush1.bf16.msra.mxu0 %v903
        %1151 = vmatprep.subr.bf16.mxu0 %v902
        %1152 = vmatpush1.bf16.msra.mxu0 %v901
        %1153 = vmatprep.subr.bf16.mxu0 %v900
        %1154 = vmatpush1.bf16.msra.mxu0 %v899
        %1155 = vmatprep.subr.bf16.mxu0 %v898
        %1156 = vmatpush1.bf16.msra.mxu0 %v897
        %1157 = vmatprep.subr.bf16.mxu0 %v896
        %1158 = vmatpush1.bf16.msra.mxu0 %v895
        %1159 = vmatprep.subr.bf16.mxu0 %v894
        %1160 = vmatpush1.bf16.msra.mxu0 %v893
        %1161 = vmatprep.subr.bf16.mxu0 %v892
        %1162 = vmatpush1.bf16.msra.mxu0 %v891
        %1163 = vmatprep.subr.bf16.mxu0 %v922
        %1164 = vmatpush2.bf16.msra.mxu0 %v921
        %1165 = vmatprep.subr.bf16.mxu0 %v920
        %1166 = vmatpush2.bf16.msra.mxu0 %v919
        %1167 = vmatprep.subr.bf16.mxu0 %v918
        %1168 = vmatpush2.bf16.msra.mxu0 %v917
        %1169 = vmatprep.subr.bf16.mxu0 %v916
        %1170 = vmatpush2.bf16.msra.mxu0 %v915
        %1171 = vmatprep.subr.bf16.mxu0 %v914
        %1172 = vmatpush2.bf16.msra.mxu0 %v913
        %1173 = vmatprep.subr.bf16.mxu0 %v912
        %1174 = vmatpush2.bf16.msra.mxu0 %v911
        %1175 = vmatprep.subr.bf16.mxu0 %v910
        %1176 = vmatpush2.bf16.msra.mxu0 %v909
        %1177 = vmatprep.subr.bf16.mxu0 %v908
        %1178 = vmatpush2.bf16.msra.mxu0 %v907
        %1179 = vmatprep.mubr.bf16.mxu0 %v444
        %1180 = vmatmul.mubr.bf16.gmra.mxu0 %v443
        %v1181 = vpop.f32.mrf.mxu0
        %v1182 = vadd.f32 %v340, %v1181
        %v1183 = vpop.f32.mrf.mxu0
        %v1184 = vadd.f32 %v344, %v1183
        %v1185 = vpop.f32.mrf.mxu0
        %v1186 = vadd.f32 %v340, %v1185
        %v1187 = vpop.f32.mrf.mxu0
        %v1188 = vadd.f32 %v344, %v1187
        %1189 = vmatprep.mubr.bf16.mxu0 %v452
        %1190 = vmatmul.mubr.bf16.gmra.mxu0 %v451
        %v1191 = vpop.f32.mrf.mxu0
        %v1192 = vadd.f32 %v340, %v1191
        %v1193 = vpop.f32.mrf.mxu0
        %v1194 = vadd.f32 %v344, %v1193
        %v1195 = vpop.f32.mrf.mxu0
        %v1196 = vadd.f32 %v340, %v1195
        %v1197 = vpop.f32.mrf.mxu0
        %v1198 = vadd.f32 %v344, %v1197
        %1199 = vmatprep.mubr.bf16.mxu0 %v460
        %1200 = vmatmul.mubr.bf16.gmra.mxu0 %v459
        %v1201 = vpop.f32.mrf.mxu0
        %v1202 = vadd.f32 %v340, %v1201
        %v1203 = vpop.f32.mrf.mxu0
        %v1204 = vadd.f32 %v344, %v1203
        %v1205 = vpop.f32.mrf.mxu0
        %v1206 = vadd.f32 %v340, %v1205
        %v1207 = vpop.f32.mrf.mxu0
        %v1208 = vadd.f32 %v344, %v1207
        %1209 = vmatprep.mubr.bf16.mxu0 %v468
        %1210 = vmatmul.mubr.bf16.gmra.mxu0 %v467
        %v1211 = vpop.f32.mrf.mxu0
        %v1212 = vadd.f32 %v340, %v1211
        %v1213 = vpop.f32.mrf.mxu0
        %v1214 = vadd.f32 %v344, %v1213
        %v1215 = vpop.f32.mrf.mxu0
        %v1216 = vadd.f32 %v340, %v1215
        %v1217 = vpop.f32.mrf.mxu0
        %v1218 = vadd.f32 %v344, %v1217
        %1219 = vdwg.mxu0
        %1220 = vmatprep.subr.bf16.mxu0 %v938
        %1221 = vmatpush1.bf16.msra.mxu0 %v937
        %1222 = vmatprep.subr.bf16.mxu0 %v936
        %1223 = vmatpush1.bf16.msra.mxu0 %v935
        %1224 = vmatprep.subr.bf16.mxu0 %v934
        %1225 = vmatpush1.bf16.msra.mxu0 %v933
        %1226 = vmatprep.subr.bf16.mxu0 %v932
        %1227 = vmatpush1.bf16.msra.mxu0 %v931
        %1228 = vmatprep.subr.bf16.mxu0 %v930
        %1229 = vmatpush1.bf16.msra.mxu0 %v929
        %1230 = vmatprep.subr.bf16.mxu0 %v928
        %1231 = vmatpush1.bf16.msra.mxu0 %v927
        %1232 = vmatprep.subr.bf16.mxu0 %v926
        %1233 = vmatpush1.bf16.msra.mxu0 %v925
        %1234 = vmatprep.subr.bf16.mxu0 %v924
        %1235 = vmatpush1.bf16.msra.mxu0 %v923
        %1236 = vmatprep.subr.bf16.mxu0 %v954
        %1237 = vmatpush2.bf16.msra.mxu0 %v953
        %1238 = vmatprep.subr.bf16.mxu0 %v952
        %1239 = vmatpush2.bf16.msra.mxu0 %v951
        %1240 = vmatprep.subr.bf16.mxu0 %v950
        %1241 = vmatpush2.bf16.msra.mxu0 %v949
        %1242 = vmatprep.subr.bf16.mxu0 %v948
        %1243 = vmatpush2.bf16.msra.mxu0 %v947
        %1244 = vmatprep.subr.bf16.mxu0 %v946
        %1245 = vmatpush2.bf16.msra.mxu0 %v945
        %1246 = vmatprep.subr.bf16.mxu0 %v944
        %1247 = vmatpush2.bf16.msra.mxu0 %v943
        %1248 = vmatprep.subr.bf16.mxu0 %v942
        %1249 = vmatpush2.bf16.msra.mxu0 %v941
        %1250 = vmatprep.subr.bf16.mxu0 %v940
        %1251 = vmatpush2.bf16.msra.mxu0 %v939
        %1252 = vmatprep.mubr.bf16.mxu0 %v446
        %1253 = vmatmul.mubr.bf16.gmra.mxu0 %v445
        %v1254 = vpop.f32.mrf.mxu0
        %v1255 = vadd.f32 %v1182, %v1254
        %v1256 = vpop.f32.mrf.mxu0
        %v1257 = vadd.f32 %v1184, %v1256
        %v1258 = vpop.f32.mrf.mxu0
        %v1259 = vadd.f32 %v1186, %v1258
        %v1260 = vpop.f32.mrf.mxu0
        %v1261 = vadd.f32 %v1188, %v1260
        %1262 = vmatprep.mubr.bf16.mxu0 %v454
        %1263 = vmatmul.mubr.bf16.gmra.mxu0 %v453
        %v1264 = vpop.f32.mrf.mxu0
        %v1265 = vadd.f32 %v1192, %v1264
        %v1266 = vpop.f32.mrf.mxu0
        %v1267 = vadd.f32 %v1194, %v1266
        %v1268 = vpop.f32.mrf.mxu0
        %v1269 = vadd.f32 %v1196, %v1268
        %v1270 = vpop.f32.mrf.mxu0
        %v1271 = vadd.f32 %v1198, %v1270
        %1272 = vmatprep.mubr.bf16.mxu0 %v462
        %1273 = vmatmul.mubr.bf16.gmra.mxu0 %v461
        %v1274 = vpop.f32.mrf.mxu0
        %v1275 = vadd.f32 %v1202, %v1274
        %v1276 = vpop.f32.mrf.mxu0
        %v1277 = vadd.f32 %v1204, %v1276
        %v1278 = vpop.f32.mrf.mxu0
        %v1279 = vadd.f32 %v1206, %v1278
        %v1280 = vpop.f32.mrf.mxu0
        %v1281 = vadd.f32 %v1208, %v1280
        %1282 = vmatprep.mubr.bf16.mxu0 %v470
        %1283 = vmatmul.mubr.bf16.gmra.mxu0 %v469
        %v1284 = vpop.f32.mrf.mxu0
        %v1285 = vadd.f32 %v1212, %v1284
        %v1286 = vpop.f32.mrf.mxu0
        %v1287 = vadd.f32 %v1214, %v1286
        %v1288 = vpop.f32.mrf.mxu0
        %v1289 = vadd.f32 %v1216, %v1288
        %v1290 = vpop.f32.mrf.mxu0
        %v1291 = vadd.f32 %v1218, %v1290
        %1292 = vdwg.mxu0
        %1293 = vmatprep.subr.bf16.mxu0 %v970
        %1294 = vmatpush1.bf16.msra.mxu0 %v969
        %1295 = vmatprep.subr.bf16.mxu0 %v968
        %1296 = vmatpush1.bf16.msra.mxu0 %v967
        %1297 = vmatprep.subr.bf16.mxu0 %v966
        %1298 = vmatpush1.bf16.msra.mxu0 %v965
        %1299 = vmatprep.subr.bf16.mxu0 %v964
        %1300 = vmatpush1.bf16.msra.mxu0 %v963
        %1301 = vmatprep.subr.bf16.mxu0 %v962
        %1302 = vmatpush1.bf16.msra.mxu0 %v961
        %1303 = vmatprep.subr.bf16.mxu0 %v960
        %1304 = vmatpush1.bf16.msra.mxu0 %v959
        %1305 = vmatprep.subr.bf16.mxu0 %v958
        %1306 = vmatpush1.bf16.msra.mxu0 %v957
        %1307 = vmatprep.subr.bf16.mxu0 %v956
        %1308 = vmatpush1.bf16.msra.mxu0 %v955
        %1309 = vmatprep.subr.bf16.mxu0 %v986
        %1310 = vmatpush2.bf16.msra.mxu0 %v985
        %1311 = vmatprep.subr.bf16.mxu0 %v984
        %1312 = vmatpush2.bf16.msra.mxu0 %v983
        %1313 = vmatprep.subr.bf16.mxu0 %v982
        %1314 = vmatpush2.bf16.msra.mxu0 %v981
        %1315 = vmatprep.subr.bf16.mxu0 %v980
        %1316 = vmatpush2.bf16.msra.mxu0 %v979
        %1317 = vmatprep.subr.bf16.mxu0 %v978
        %1318 = vmatpush2.bf16.msra.mxu0 %v977
        %1319 = vmatprep.subr.bf16.mxu0 %v976
        %1320 = vmatpush2.bf16.msra.mxu0 %v975
        %1321 = vmatprep.subr.bf16.mxu0 %v974
        %1322 = vmatpush2.bf16.msra.mxu0 %v973
        %1323 = vmatprep.subr.bf16.mxu0 %v972
        %1324 = vmatpush2.bf16.msra.mxu0 %v971
        %1325 = vmatprep.mubr.bf16.mxu0 %v448
        %1326 = vmatmul.mubr.bf16.gmra.mxu0 %v447
        %v1327 = vpop.f32.mrf.mxu0
        %v1328 = vadd.f32 %v1255, %v1327
        %v1329 = vpop.f32.mrf.mxu0
        %v1330 = vadd.f32 %v1257, %v1329
        %v1331 = vpop.f32.mrf.mxu0
        %v1332 = vadd.f32 %v1259, %v1331
        %v1333 = vpop.f32.mrf.mxu0
        %v1334 = vadd.f32 %v1261, %v1333
        %1335 = vmatprep.mubr.bf16.mxu0 %v456
        %1336 = vmatmul.mubr.bf16.gmra.mxu0 %v455
        %v1337 = vpop.f32.mrf.mxu0
        %v1338 = vadd.f32 %v1265, %v1337
        %v1339 = vpop.f32.mrf.mxu0
        %v1340 = vadd.f32 %v1267, %v1339
        %v1341 = vpop.f32.mrf.mxu0
        %v1342 = vadd.f32 %v1269, %v1341
        %v1343 = vpop.f32.mrf.mxu0
        %v1344 = vadd.f32 %v1271, %v1343
        %1345 = vmatprep.mubr.bf16.mxu0 %v464
        %1346 = vmatmul.mubr.bf16.gmra.mxu0 %v463
        %v1347 = vpop.f32.mrf.mxu0
        %v1348 = vadd.f32 %v1275, %v1347
        %v1349 = vpop.f32.mrf.mxu0
        %v1350 = vadd.f32 %v1277, %v1349
        %v1351 = vpop.f32.mrf.mxu0
        %v1352 = vadd.f32 %v1279, %v1351
        %v1353 = vpop.f32.mrf.mxu0
        %v1354 = vadd.f32 %v1281, %v1353
        %1355 = vmatprep.mubr.bf16.mxu0 %v472
        %1356 = vmatmul.mubr.bf16.gmra.mxu0 %v471
        %v1357 = vpop.f32.mrf.mxu0
        %v1358 = vadd.f32 %v1285, %v1357
        %v1359 = vpop.f32.mrf.mxu0
        %v1360 = vadd.f32 %v1287, %v1359
        %v1361 = vpop.f32.mrf.mxu0
        %v1362 = vadd.f32 %v1289, %v1361
        %v1363 = vpop.f32.mrf.mxu0
        %v1364 = vadd.f32 %v1291, %v1363
        %1365 = vdwg.mxu0
        %1366 = vmatprep.subr.bf16.mxu0 %v1002
        %1367 = vmatpush1.bf16.msra.mxu0 %v1001
        %1368 = vmatprep.subr.bf16.mxu0 %v1000
        %1369 = vmatpush1.bf16.msra.mxu0 %v999
        %1370 = vmatprep.subr.bf16.mxu0 %v998
        %1371 = vmatpush1.bf16.msra.mxu0 %v997
        %1372 = vmatprep.subr.bf16.mxu0 %v996
        %1373 = vmatpush1.bf16.msra.mxu0 %v995
        %1374 = vmatprep.subr.bf16.mxu0 %v994
        %1375 = vmatpush1.bf16.msra.mxu0 %v993
        %1376 = vmatprep.subr.bf16.mxu0 %v992
        %1377 = vmatpush1.bf16.msra.mxu0 %v991
        %1378 = vmatprep.subr.bf16.mxu0 %v990
        %1379 = vmatpush1.bf16.msra.mxu0 %v989
        %1380 = vmatprep.subr.bf16.mxu0 %v988
        %1381 = vmatpush1.bf16.msra.mxu0 %v987
        %1382 = vmatprep.subr.bf16.mxu0 %v1018
        %1383 = vmatpush2.bf16.msra.mxu0 %v1017
        %1384 = vmatprep.subr.bf16.mxu0 %v1016
        %1385 = vmatpush2.bf16.msra.mxu0 %v1015
        %1386 = vmatprep.subr.bf16.mxu0 %v1014
        %1387 = vmatpush2.bf16.msra.mxu0 %v1013
        %1388 = vmatprep.subr.bf16.mxu0 %v1012
        %1389 = vmatpush2.bf16.msra.mxu0 %v1011
        %1390 = vmatprep.subr.bf16.mxu0 %v1010
        %1391 = vmatpush2.bf16.msra.mxu0 %v1009
        %1392 = vmatprep.subr.bf16.mxu0 %v1008
        %1393 = vmatpush2.bf16.msra.mxu0 %v1007
        %1394 = vmatprep.subr.bf16.mxu0 %v1006
        %1395 = vmatpush2.bf16.msra.mxu0 %v1005
        %1396 = vmatprep.subr.bf16.mxu0 %v1004
        %1397 = vmatpush2.bf16.msra.mxu0 %v1003
        %1398 = vmatprep.mubr.bf16.mxu0 %v450
        %1399 = vmatmul.mubr.bf16.gmra.mxu0 %v449
        %v1400 = vpop.f32.mrf.mxu0
        %v1401 = vadd.f32 %v1328, %v1400
        %v1402 = vpop.f32.mrf.mxu0
        %v1403 = vadd.f32 %v1330, %v1402
        %v1404 = vpop.f32.mrf.mxu0
        %v1405 = vadd.f32 %v1332, %v1404
        %v1406 = vpop.f32.mrf.mxu0
        %v1407 = vadd.f32 %v1334, %v1406
        %1408 = vmatprep.mubr.bf16.mxu0 %v458
        %1409 = vmatmul.mubr.bf16.gmra.mxu0 %v457
        %v1410 = vpop.f32.mrf.mxu0
        %v1411 = vadd.f32 %v1338, %v1410
        %v1412 = vpop.f32.mrf.mxu0
        %v1413 = vadd.f32 %v1340, %v1412
        %v1414 = vpop.f32.mrf.mxu0
        %v1415 = vadd.f32 %v1342, %v1414
        %v1416 = vpop.f32.mrf.mxu0
        %v1417 = vadd.f32 %v1344, %v1416
        %1418 = vmatprep.mubr.bf16.mxu0 %v466
        %1419 = vmatmul.mubr.bf16.gmra.mxu0 %v465
        %v1420 = vpop.f32.mrf.mxu0
        %v1421 = vadd.f32 %v1348, %v1420
        %v1422 = vpop.f32.mrf.mxu0
        %v1423 = vadd.f32 %v1350, %v1422
        %v1424 = vpop.f32.mrf.mxu0
        %v1425 = vadd.f32 %v1352, %v1424
        %v1426 = vpop.f32.mrf.mxu0
        %v1427 = vadd.f32 %v1354, %v1426
        %1428 = vmatprep.mubr.bf16.mxu0 %v474
        %1429 = vmatmul.mubr.bf16.gmra.mxu0 %v473
        %v1430 = vpop.f32.mrf.mxu0
        %v1431 = vadd.f32 %v1358, %v1430
        %v1432 = vpop.f32.mrf.mxu0
        %v1433 = vadd.f32 %v1360, %v1432
        %v1434 = vpop.f32.mrf.mxu0
        %v1435 = vadd.f32 %v1362, %v1434
        %v1436 = vpop.f32.mrf.mxu0
        %v1437 = vadd.f32 %v1364, %v1436
        %1438 = vdwg.mxu0
        %1439 = vst [vmem:[%s166] sm:$0xff] %v1401
        %1440 = vst [vmem:[%s166 + $0x8] sm:$0xff] %v1403
        %1441 = vst [vmem:[%s166 + $0x10] sm:$0xff] %v1405
        %1442 = vst [vmem:[%s166 + $0x18] sm:$0xff] %v1407
        %1443 = vst [vmem:[%s166 + $0x20] sm:$0xff] %v1411
        %1444 = vst [vmem:[%s166 + $0x28] sm:$0xff] %v1413
        %1445 = vst [vmem:[%s166 + $0x30] sm:$0xff] %v1415
        %1446 = vst [vmem:[%s166 + $0x38] sm:$0xff] %v1417
        %1447 = vst [vmem:[%s166 + $0x40] sm:$0xff] %v1421
        %1448 = vst [vmem:[%s166 + $0x48] sm:$0xff] %v1423
        %1449 = vst [vmem:[%s166 + $0x50] sm:$0xff] %v1425
        %1450 = vst [vmem:[%s166 + $0x58] sm:$0xff] %v1427
        %1451 = vst [vmem:[%s166 + $0x60] sm:$0xff] %v1431
        %1452 = vst [vmem:[%s166 + $0x68] sm:$0xff] %v1433
        %1453 = vst [vmem:[%s166 + $0x70] sm:$0xff] %v1435
        %1454 = vst [vmem:[%s166 + $0x78] sm:$0xff] %v1437
        %s1455 = sand.u32 %s93, 1
        %s1456 = scalar_lea.sflag [#allocation3], %s1455
        %s1457 = sand.u32 %s93, 1
        %s1458 = smul.addr %s1457, 128
        %s1459 = scalar_lea.vmem [#allocation2], %s1458
        // Predicated region
        $region33: #{_lambda_.1} parent=31 // pred_check
          %p1460 = pneg %p103
        $region34: #{_lambda_.1} parent=31 // pred_check_branch
          %1462 = sbr.rel (%p1460) target = $region36
        $region35: #{_lambda_.1} parent=31 // pred_region
          %s1463 = smul.u32 8, %s17
          %s1465 = ssub.s32 2048, 2048
          %1466 = vsyncadd %s1456, %s1465
          %s1467 = smul.addr %s1463, 2
          %s1468 = smul.addr %s1467, 128
          %s1469 = scalar_lea.hbm %s3, %s1468
          %s1470 = sshll.u32 %s1459, 4
          %s1471 = int_to_ptr.vmem [resolvable:$true] %s1470
          %1476 = dma.vmem_to_hbm [thread:$0]  %s1471, 2048, %s1469, %s1456, 256, 256, 16
        $region36: #{_lambda_.1} parent=31 // pred_fallthru
          _
      $region32: #{_lambda_.1} parent=5 // pred_fallthru
        _
      %p1477 = scmp.le.s32.totalorder 2, %s12
      // Predicated region
      $region37: #{_lambda_.1} parent=5 // pred_check
        %p1478 = pneg %p1477
      $region38: #{_lambda_.1} parent=5 // pred_check_branch
        %1480 = sbr.rel (%p1478) target = $region40
      $region39: #{_lambda_.1} parent=5 // pred_region
        %s1481 = ssub.s32 %s12, 2
        // Predicated region
        $region41: #{_lambda_.1} parent=39 // pred_check
          %p1482 = pneg %p109
        $region42: #{_lambda_.1} parent=39 // pred_check_branch
          %1484 = sbr.rel (%p1482) target = $region44
        $region43: #{_lambda_.1} parent=39 // pred_region
          %s1485 = sand.u32 %s94, 1
          %s1486 = scalar_lea.sflag [#allocation3], %s1485
          %s1487 = sand.u32 %s94, 1
          %s1488 = smul.addr %s1487, 128
          %s1489 = scalar_lea.vmem [#allocation2], %s1488
          %1490 = dma.done %s1486, 2048
        $region44: #{_lambda_.1} parent=39 // pred_fallthru
          _
      $region40: #{_lambda_.1} parent=5 // pred_fallthru
        _
    $region6: #{_lambda_.1} parent=1 // loop_footer
      %s16 = sadd.s32 1, %s12
    $region7: #{_lambda_.1} parent=1 // loop_footer_branch
      %11 = sbr.rel target = $region3
    $region8: #{_lambda_.1} parent=1 // loop_exit
      _
    %1491 = vsyncpa [#allocation3], 1
    %s1492 = scalar_lea.sflag [#allocation3], 1
    %1493 = vsyncpa %s1492, 1

</llo_original>
